<compile_context>
chip_gen: v7x
topology: tpu7x:2x2x1
jax: 0.10.0
libtpu: 0.0.40
codegen_flags: <defaults>
</compile_context>

<pallas_src>
import functools

import jax
import jax.numpy as jnp
from jax.experimental import pallas as pl
from jax.experimental.pallas import tpu as pltpu


def _log_sigmoid(x):
    # Numerically stable log(sigmoid(x)), matches torch.nn.LogSigmoid.
    return jnp.minimum(x, 0.0) - jnp.log1p(jnp.exp(-jnp.abs(x)))


def _skipgram_kernel(tgt_ref, ctx_ref, neg_ref,   # [TB,1], [TB,1], [TB,N] int32 (VMEM tiles)
                     tab_ref,                     # [V, D] embedding table (VMEM, resident)
                     out_ref,                     # [TB, 1] per-row loss
                     *, tb, neg_size, vocab):
    table = tab_ref[...]                          # resident; used directly by the MXU
    dt = table.dtype

    # [TB, V] column-index iota shared by all one-hot builds (VPU compares).
    vocab_iota = jax.lax.broadcasted_iota(jnp.int32, (tb, vocab), 1)

    tgt_oh = (vocab_iota == tgt_ref[...]).astype(dt)          # [TB, V] one-hot(target)
    ctx_oh = (vocab_iota == ctx_ref[...]).astype(dt)          # [TB, V] one-hot(context)

    # Negative samples folded into a count matrix: counts @ table == sum_n u_hat.
    neg_idx = neg_ref[...]                                     # [TB, N]
    counts = jnp.zeros((tb, vocab), dtype=dt)
    for n in range(neg_size):                                  # static, small N
        counts = counts + (vocab_iota == neg_idx[:, n:n + 1]).astype(dt)

    # Gather via MXU matmuls; accumulate in f32 regardless of table dtype.
    v = jnp.dot(tgt_oh, table, preferred_element_type=jnp.float32)    # [TB, D]
    u = jnp.dot(ctx_oh, table, preferred_element_type=jnp.float32)    # [TB, D]
    us = jnp.dot(counts, table, preferred_element_type=jnp.float32)   # [TB, D] = sum_n u_hat

    pos_score = jnp.sum(u * v, axis=1, keepdims=True)                 # [TB, 1]
    neg_score = jnp.sum(us * v, axis=1, keepdims=True)                # [TB, 1]

    out_ref[...] = _log_sigmoid(pos_score) + _log_sigmoid(-neg_score)


def skipgram_neg_loss(emb_table, target_input, context, neg, *, block_b=None):
    """Forward pass of SkipGramNeg.

    emb_table:    [vocab_size, emb_dim] f32 or bf16 (accumulation stays f32)
    target_input: [B]      int32
    context:      [B]      int32
    neg:          [B, N]   int32
    returns scalar f32 loss (identical semantics to the PyTorch module).
    """
    V, D = emb_table.shape
    B = target_input.shape[0]
    N = neg.shape[1]

    if block_b is None:
        block_b = min(512, B)
    block_b = max(8, -(-block_b // 8) * 8)                 # multiple of 8
    # Keep each [TB, V] f32 one-hot intermediate <= ~2 MiB of VMEM.
    max_tb = max(8, ((2 * 1024 * 1024) // max(V * 4, 1)) // 8 * 8)
    block_b = min(block_b, max_tb)

    num_tiles = pl.cdiv(B, block_b)
    b_pad = num_tiles * block_b
    pad = b_pad - B

    tgt = jnp.pad(target_input.astype(jnp.int32), (0, pad)).reshape(b_pad, 1)
    ctx = jnp.pad(context.astype(jnp.int32), (0, pad)).reshape(b_pad, 1)
    negp = jnp.pad(neg.astype(jnp.int32), ((0, pad), (0, 0)))

    kernel = functools.partial(_skipgram_kernel, tb=block_b, neg_size=N, vocab=V)

    per_row = pl.pallas_call(
        kernel,
        out_shape=jax.ShapeDtypeStruct((b_pad, 1), jnp.float32),
        grid=(num_tiles,),
        in_specs=[
            pl.BlockSpec((block_b, 1), lambda i: (i, 0)),
            pl.BlockSpec((block_b, 1), lambda i: (i, 0)),
            pl.BlockSpec((block_b, N), lambda i: (i, 0)),
            # Whole table, single-buffered, DMA'd into VMEM once (no pipelining).
            pl.BlockSpec(memory_space=pltpu.MemorySpace.VMEM),
        ],
        out_specs=pl.BlockSpec((block_b, 1), lambda i: (i, 0)),
        compiler_params=pltpu.CompilerParams(
            dimension_semantics=("parallel",),
            vmem_limit_bytes=48 * 1024 * 1024,
        ),
    )(tgt, ctx, negp, emb_table)

    # Padded rows (index 0, finite values) are sliced off before the mean.
    return -jnp.sum(per_row[:B, 0]) / B


def reference_loss(emb_table, target_input, context, neg):
    # Pure-JAX mirror of the PyTorch module (logsigmoid of the SUM over negatives).
    v = jnp.take(emb_table, target_input, axis=0)
    u = jnp.take(emb_table, context, axis=0)
    u_hat = jnp.take(emb_table, neg, axis=0)
    pos = _log_sigmoid(jnp.sum(u * v, axis=1))
    neg_vals = jnp.einsum("bnd,bd->bn", u_hat, v)
    negv = _log_sigmoid(-jnp.sum(neg_vals, axis=1))
    return -jnp.mean(pos + negv)


if __name__ == "__main__":
    vocab_size = 256
    emb_dim = 128          # lane-dense last dim (full 128-lane vregs)
    batch = 12             # deliberately not a multiple of block_b: exercises padding
    neg_size = 4
    block_b = 8            # 2 grid tiles

    key = jax.random.PRNGKey(0)
    k_emb, k_t, k_c, k_n = jax.random.split(key, 4)

    # nn.Embedding.reset_parameters() draws from N(0, 1).
    emb_table = jax.random.normal(k_emb, (vocab_size, emb_dim), dtype=jnp.float32)

    target_input = jax.random.randint(k_t, (batch,), 0, vocab_size, dtype=jnp.int32)
    context = jax.random.randint(k_c, (batch,), 0, vocab_size, dtype=jnp.int32)
    neg = jax.random.randint(k_n, (batch, neg_size), 0, vocab_size, dtype=jnp.int32)

    loss_fn = jax.jit(functools.partial(skipgram_neg_loss, block_b=block_b))
    loss = loss_fn(emb_table, target_input, context, neg)
    jax.block_until_ready(loss)

    ref = reference_loss(emb_table, target_input, context, neg)
    assert jnp.allclose(loss, ref, atol=2e-4, rtol=2e-4), (loss, ref)

    print("KERNEL_OK")
</pallas_src>

<mosaic_0001>
module attributes {stable_mosaic.version = 11 : i64} {
  func.func @_skipgram_kernel(%arg0: i32, %arg1: memref<8x1xi32, #tpu.memory_space<vmem>>, %arg2: memref<8x1xi32, #tpu.memory_space<vmem>>, %arg3: memref<8x4xi32, #tpu.memory_space<vmem>>, %arg4: memref<256x128xf32, #tpu.memory_space<vmem>>, %arg5: memref<8x1xf32, #tpu.memory_space<vmem>>) attributes {dimension_semantics = [#tpu.dimension_semantics<parallel>], iteration_bounds = array<i64: 2>, scalar_prefetch = 0 : i64, scratch_operands = 0 : i64, tpu.core_type = #tpu.core_type<tc>, window_params = [{transform_indices = @transform_0, window_bounds = array<i64: 8, 1>}, {transform_indices = @transform_1, window_bounds = array<i64: 8, 1>}, {transform_indices = @transform_2, window_bounds = array<i64: 8, 4>}, {pipeline_mode = #tpu.pipeline_mode<synchronous>, transform_indices = @transform_3, window_bounds = array<i64: 256, 128>}, {transform_indices = @transform_4, window_bounds = array<i64: 8, 1>}]} {
    %c0 = arith.constant 0 : index
    %c0_0 = arith.constant 0 : index
    %0 = vector.load %arg4[%c0, %c0_0] : memref<256x128xf32, #tpu.memory_space<vmem>>, vector<256x128xf32>
    %1 = tpu.iota {dimensions = array<i32: 1>} : vector<8x256xi32>
    %c0_1 = arith.constant 0 : index
    %c0_2 = arith.constant 0 : index
    %2 = vector.load %arg1[%c0_1, %c0_2] : memref<8x1xi32, #tpu.memory_space<vmem>>, vector<8x1xi32>
    %3 = vector.broadcast %2 : vector<8x1xi32> to vector<8x256xi32>
    %4 = arith.cmpi eq, %1, %3 : vector<8x256xi32>
    %5 = arith.extui %4 : vector<8x256xi1> to vector<8x256xi32>
    %6 = arith.sitofp %5 : vector<8x256xi32> to vector<8x256xf32>
    %c0_3 = arith.constant 0 : index
    %c0_4 = arith.constant 0 : index
    %7 = vector.load %arg2[%c0_3, %c0_4] : memref<8x1xi32, #tpu.memory_space<vmem>>, vector<8x1xi32>
    %8 = vector.broadcast %7 : vector<8x1xi32> to vector<8x256xi32>
    %9 = arith.cmpi eq, %1, %8 : vector<8x256xi32>
    %10 = arith.extui %9 : vector<8x256xi1> to vector<8x256xi32>
    %11 = arith.sitofp %10 : vector<8x256xi32> to vector<8x256xf32>
    %c0_5 = arith.constant 0 : index
    %c0_6 = arith.constant 0 : index
    %12 = vector.load %arg3[%c0_5, %c0_6] : memref<8x4xi32, #tpu.memory_space<vmem>>, vector<8x4xi32>
    %cst = arith.constant 0.000000e+00 : f32
    %13 = vector.broadcast %cst : f32 to vector<8x256xf32>
    %14 = vector.extract_strided_slice %12 {offsets = [0, 0], sizes = [8, 1], strides = [1, 1]} : vector<8x4xi32> to vector<8x1xi32>
    %15 = vector.broadcast %14 : vector<8x1xi32> to vector<8x256xi32>
    %16 = arith.cmpi eq, %1, %15 : vector<8x256xi32>
    %17 = arith.extui %16 : vector<8x256xi1> to vector<8x256xi32>
    %18 = arith.sitofp %17 : vector<8x256xi32> to vector<8x256xf32>
    %19 = arith.addf %13, %18 : vector<8x256xf32>
    %20 = vector.extract_strided_slice %12 {offsets = [0, 1], sizes = [8, 1], strides = [1, 1]} : vector<8x4xi32> to vector<8x1xi32>
    %21 = vector.broadcast %20 : vector<8x1xi32> to vector<8x256xi32>
    %22 = arith.cmpi eq, %1, %21 : vector<8x256xi32>
    %23 = arith.extui %22 : vector<8x256xi1> to vector<8x256xi32>
    %24 = arith.sitofp %23 : vector<8x256xi32> to vector<8x256xf32>
    %25 = arith.addf %19, %24 : vector<8x256xf32>
    %26 = vector.extract_strided_slice %12 {offsets = [0, 2], sizes = [8, 1], strides = [1, 1]} : vector<8x4xi32> to vector<8x1xi32>
    %27 = vector.broadcast %26 : vector<8x1xi32> to vector<8x256xi32>
    %28 = arith.cmpi eq, %1, %27 : vector<8x256xi32>
    %29 = arith.extui %28 : vector<8x256xi1> to vector<8x256xi32>
    %30 = arith.sitofp %29 : vector<8x256xi32> to vector<8x256xf32>
    %31 = arith.addf %25, %30 : vector<8x256xf32>
    %32 = vector.extract_strided_slice %12 {offsets = [0, 3], sizes = [8, 1], strides = [1, 1]} : vector<8x4xi32> to vector<8x1xi32>
    %33 = vector.broadcast %32 : vector<8x1xi32> to vector<8x256xi32>
    %34 = arith.cmpi eq, %1, %33 : vector<8x256xi32>
    %35 = arith.extui %34 : vector<8x256xi1> to vector<8x256xi32>
    %36 = arith.sitofp %35 : vector<8x256xi32> to vector<8x256xf32>
    %37 = arith.addf %31, %36 : vector<8x256xf32>
    %cst_7 = arith.constant dense<0.000000e+00> : vector<8x128xf32>
    %38 = tpu.matmul %6, %0, %cst_7 {dimension_numbers = #tpu.dot_dimension_numbers<[1], [0], [0], [1], [0, 0, 1, 1], [], []>} : vector<8x256xf32>, vector<256x128xf32>, vector<8x128xf32> -> vector<8x128xf32>
    %cst_8 = arith.constant dense<0.000000e+00> : vector<8x128xf32>
    %39 = tpu.matmul %11, %0, %cst_8 {dimension_numbers = #tpu.dot_dimension_numbers<[1], [0], [0], [1], [0, 0, 1, 1], [], []>} : vector<8x256xf32>, vector<256x128xf32>, vector<8x128xf32> -> vector<8x128xf32>
    %cst_9 = arith.constant dense<0.000000e+00> : vector<8x128xf32>
    %40 = tpu.matmul %37, %0, %cst_9 {dimension_numbers = #tpu.dot_dimension_numbers<[1], [0], [0], [1], [0, 0, 1, 1], [], []>} : vector<8x256xf32>, vector<256x128xf32>, vector<8x128xf32> -> vector<8x128xf32>
    %41 = arith.mulf %39, %38 : vector<8x128xf32>
    %cst_10 = arith.constant dense<0.000000e+00> : vector<8xf32>
    %42 = vector.multi_reduction <add>, %41, %cst_10 [1] : vector<8x128xf32> to vector<8xf32>
    %43 = vector.shape_cast %42 : vector<8xf32> to vector<8x1xf32>
    %44 = arith.mulf %40, %38 : vector<8x128xf32>
    %cst_11 = arith.constant dense<0.000000e+00> : vector<8xf32>
    %45 = vector.multi_reduction <add>, %44, %cst_11 [1] : vector<8x128xf32> to vector<8xf32>
    %46 = vector.shape_cast %45 : vector<8xf32> to vector<8x1xf32>
    %cst_12 = arith.constant 0.000000e+00 : f32
    %47 = vector.broadcast %cst_12 : f32 to vector<8x1xf32>
    %48 = arith.minimumf %43, %47 : vector<8x1xf32>
    %49 = math.absf %43 : vector<8x1xf32>
    %cst_13 = arith.constant 0.000000e+00 : f32
    %50 = vector.broadcast %cst_13 : f32 to vector<8x1xf32>
    %51 = arith.subf %50, %49 : vector<8x1xf32>
    %52 = math.exp %51 : vector<8x1xf32>
    %53 = math.log1p %52 : vector<8x1xf32>
    %54 = arith.subf %48, %53 : vector<8x1xf32>
    %cst_14 = arith.constant 0.000000e+00 : f32
    %55 = vector.broadcast %cst_14 : f32 to vector<8x1xf32>
    %56 = arith.subf %55, %46 : vector<8x1xf32>
    %cst_15 = arith.constant 0.000000e+00 : f32
    %57 = vector.broadcast %cst_15 : f32 to vector<8x1xf32>
    %58 = arith.minimumf %56, %57 : vector<8x1xf32>
    %59 = math.absf %56 : vector<8x1xf32>
    %cst_16 = arith.constant 0.000000e+00 : f32
    %60 = vector.broadcast %cst_16 : f32 to vector<8x1xf32>
    %61 = arith.subf %60, %59 : vector<8x1xf32>
    %62 = math.exp %61 : vector<8x1xf32>
    %63 = math.log1p %62 : vector<8x1xf32>
    %64 = arith.subf %58, %63 : vector<8x1xf32>
    %65 = arith.addf %54, %64 : vector<8x1xf32>
    %c0_17 = arith.constant 0 : index
    %c0_18 = arith.constant 0 : index
    %66 = vector.load %arg5[%c0_17, %c0_18] : memref<8x1xf32, #tpu.memory_space<vmem>>, vector<8x1xf32>
    tpu.vector_store %arg5[%c0_17, %c0_18], %65 {strides = array<i32>} : memref<8x1xf32, #tpu.memory_space<vmem>>, vector<8x1xf32>,
    return
  }
  func.func @transform_0(%arg0: i32) -> (i32, i32) {
    %c0_i32 = arith.constant 0 : i32
    %c0_i32_0 = arith.constant 0 : i32
    return %arg0, %c0_i32 : i32, i32
  }
  func.func @transform_1(%arg0: i32) -> (i32, i32) {
    %c0_i32 = arith.constant 0 : i32
    %c0_i32_0 = arith.constant 0 : i32
    return %arg0, %c0_i32 : i32, i32
  }
  func.func @transform_2(%arg0: i32) -> (i32, i32) {
    %c0_i32 = arith.constant 0 : i32
    %c0_i32_0 = arith.constant 0 : i32
    return %arg0, %c0_i32 : i32, i32
  }
  func.func @transform_3(%arg0: i32) -> (i32, i32) {
    %c0_i32 = arith.constant 0 : i32
    %c0_i32_0 = arith.constant 0 : i32
    %c0_i32_1 = arith.constant 0 : i32
    return %c0_i32, %c0_i32_0 : i32, i32
  }
  func.func @transform_4(%arg0: i32) -> (i32, i32) {
    %c0_i32 = arith.constant 0 : i32
    %c0_i32_0 = arith.constant 0 : i32
    return %arg0, %c0_i32 : i32, i32
  }
}

</mosaic_0001>

<llo_original>
// kernel: skipgram_neg_loss.1
$region0: #{skipgram_neg_loss.1}
  #allocation0 [shape = 'u32[]', space=smem, size = 0x4, offset = 0x4, fixed_abs, tag = 'smem constant byte address 0x4 - core index']
  #allocation1 [shape = 'u32[144,128]{1,0:T(1,128)}', space=vmem, size = 0x12000, scoped, tag = 'internal scratch']
  %s0 = inlined_call_operand.vmem [shape: s32[16,1], index: 0, kind: input, shape index: {}]
  %s1 = inlined_call_operand.vmem [shape: s32[16,1], index: 1, kind: input, shape index: {}]
  %s2 = inlined_call_operand.vmem [shape: s32[16,4], index: 2, kind: input, shape index: {}]
  %s3 = inlined_call_operand.hbm [shape: f32[256,128], index: 3, kind: input, shape index: {}]
  %s4 = inlined_call_operand.vmem [shape: f32[16,1], index: 4, kind: output, shape index: {}]
  %s5 = sld [smem:[#allocation0]]
  $region53: #{skipgram_neg_loss.1} parent=0
    _
  %s7 = ssub.s32 1, %s5
  %s8 = scalar_select 0, %s7, %s5
  $region1: #{skipgram_neg_loss.1} parent=0
    #allocation2 [shape = 'u8[131072]{0}', space=vmem, size = 0x20000, scoped, tag = 'input window, operand 3, single buffered']
    #allocation3 [shape = 's32[2]{0}', space=sflag, size = 0x8, scoped, tag = 'scoped memory for skipgram_neg_loss.1']
    %9 = vsyncpa [#allocation3], 0
    loop: start=0, step=1, limit=4
    $region2: #{skipgram_neg_loss.1} parent=1 // loop_pre_header
      _
    $region3: #{skipgram_neg_loss.1} parent=1 // loop_header
      %s11 = sphi 0, %s15
      %p12 = scmp.ge.s32.totalorder %s11, 4
      %s21 = sphi 0, %s23
      %s24 = sphi 0, %s21
      %s25 = sphi 0, %s24
      %s41 = sphi 0, %s25
      %s47 = sphi 0, %s49
      %s50 = sphi 0, %s47
      %s51 = sphi 0, %s50
      %s67 = sphi 0, %s51
      %s73 = sphi 0, %s75
      %s76 = sphi 0, %s73
      %s77 = sphi 0, %s76
      %s93 = sphi 0, %s77
      %s97 = sphi 0, %s97
      %s99 = sphi 0, %s97
      %s100 = sphi 0, %s99
      %s114 = sphi 0, %s100
      %s120 = sphi 0, %s122
      %s123 = sphi 0, %s120
      %s124 = sphi 0, %s123
      %s140 = sphi 0, %s124
    $region4: #{skipgram_neg_loss.1} parent=1 // loop_header_branch
      %14 = sbr.rel (%p12) target = $region8
    $region5: #{skipgram_neg_loss.1} parent=1 // loop_body
      %s16 = ssub.s32 %s11, 1
      %s17 = ssub.s32 %s11, 2
      %s18 = sadd.s32 %s11, 1
      %s19 = ssub.s32 %s11, %s18
      %p20 = scmp.eq.s32.totalorder %s19, 0
      %s22 = sadd.s32 %s21, 1
      %s23 = scalar_select %p20, %s21, %s22
      %p26 = pneg %p20
      %p27 = scmp.eq.s32.totalorder %s11, 1
      %p28 = por %p26, %p27
      %p29 = scmp.ne.s32.totalorder %s21, %s24
      %p30 = scmp.eq.s32.totalorder %s11, 0
      %p31 = por %p29, %p30
      %p32 = scmp.ne.s32.totalorder %s21, %s24
      %p33 = scmp.eq.s32.totalorder %s16, 1
      %p34 = por %p32, %p33
      %p35 = scmp.ne.s32.totalorder %s24, %s25
      %p36 = scmp.eq.s32.totalorder %s16, 0
      %p37 = por %p35, %p36
      %p38 = scmp.ne.s32.totalorder %s24, %s25
      %p39 = scmp.eq.s32.totalorder %s17, 1
      %p40 = por %p38, %p39
      %p42 = scmp.ne.s32.totalorder %s25, %s41
      %p43 = scmp.eq.s32.totalorder %s17, 0
      %p44 = por %p42, %p43
      %s45 = ssub.s32 %s11, %s18
      %p46 = scmp.eq.s32.totalorder %s45, 0
      %s48 = sadd.s32 %s47, 1
      %s49 = scalar_select %p46, %s47, %s48
      %p52 = pneg %p46
      %p53 = scmp.eq.s32.totalorder %s11, 1
      %p54 = por %p52, %p53
      %p55 = scmp.ne.s32.totalorder %s47, %s50
      %p56 = scmp.eq.s32.totalorder %s11, 0
      %p57 = por %p55, %p56
      %p58 = scmp.ne.s32.totalorder %s47, %s50
      %p59 = scmp.eq.s32.totalorder %s16, 1
      %p60 = por %p58, %p59
      %p61 = scmp.ne.s32.totalorder %s50, %s51
      %p62 = scmp.eq.s32.totalorder %s16, 0
      %p63 = por %p61, %p62
      %p64 = scmp.ne.s32.totalorder %s50, %s51
      %p65 = scmp.eq.s32.totalorder %s17, 1
      %p66 = por %p64, %p65
      %p68 = scmp.ne.s32.totalorder %s51, %s67
      %p69 = scmp.eq.s32.totalorder %s17, 0
      %p70 = por %p68, %p69
      %s71 = ssub.s32 %s11, %s18
      %p72 = scmp.eq.s32.totalorder %s71, 0
      %s74 = sadd.s32 %s73, 1
      %s75 = scalar_select %p72, %s73, %s74
      %p78 = pneg %p72
      %p79 = scmp.eq.s32.totalorder %s11, 1
      %p80 = por %p78, %p79
      %p81 = scmp.ne.s32.totalorder %s73, %s76
      %p82 = scmp.eq.s32.totalorder %s11, 0
      %p83 = por %p81, %p82
      %p84 = scmp.ne.s32.totalorder %s73, %s76
      %p85 = scmp.eq.s32.totalorder %s16, 1
      %p86 = por %p84, %p85
      %p87 = scmp.ne.s32.totalorder %s76, %s77
      %p88 = scmp.eq.s32.totalorder %s16, 0
      %p89 = por %p87, %p88
      %p90 = scmp.ne.s32.totalorder %s76, %s77
      %p91 = scmp.eq.s32.totalorder %s17, 1
      %p92 = por %p90, %p91
      %p94 = scmp.ne.s32.totalorder %s77, %s93
      %p95 = scmp.eq.s32.totalorder %s17, 0
      %p96 = por %p94, %p95
      %s98 = sadd.s32 %s97, 1
      %p101 = scmp.eq.s32.totalorder %s11, 1
      %p102 = scmp.ne.s32.totalorder %s97, %s99
      %p103 = scmp.eq.s32.totalorder %s11, 0
      %p104 = por %p102, %p103
      %p105 = scmp.ne.s32.totalorder %s97, %s99
      %p106 = scmp.eq.s32.totalorder %s16, 1
      %p107 = por %p105, %p106
      %p108 = scmp.ne.s32.totalorder %s99, %s100
      %p109 = scmp.eq.s32.totalorder %s16, 0
      %p110 = por %p108, %p109
      %p111 = scmp.ne.s32.totalorder %s99, %s100
      %p112 = scmp.eq.s32.totalorder %s17, 1
      %p113 = por %p111, %p112
      %p115 = scmp.ne.s32.totalorder %s100, %s114
      %p116 = scmp.eq.s32.totalorder %s17, 0
      %p117 = por %p115, %p116
      %s118 = ssub.s32 %s11, %s18
      %p119 = scmp.eq.s32.totalorder %s118, 0
      %s121 = sadd.s32 %s120, 1
      %s122 = scalar_select %p119, %s120, %s121
      %p125 = pneg %p119
      %p126 = scmp.eq.s32.totalorder %s11, 1
      %p127 = por %p125, %p126
      %p128 = scmp.ne.s32.totalorder %s120, %s123
      %p129 = scmp.eq.s32.totalorder %s11, 0
      %p130 = por %p128, %p129
      %p131 = scmp.ne.s32.totalorder %s120, %s123
      %p132 = scmp.eq.s32.totalorder %s16, 1
      %p133 = por %p131, %p132
      %p134 = scmp.ne.s32.totalorder %s123, %s124
      %p135 = scmp.eq.s32.totalorder %s16, 0
      %p136 = por %p134, %p135
      %p137 = scmp.ne.s32.totalorder %s123, %s124
      %p138 = scmp.eq.s32.totalorder %s17, 1
      %p139 = por %p137, %p138
      %p141 = scmp.ne.s32.totalorder %s124, %s140
      %p142 = scmp.eq.s32.totalorder %s17, 0
      %p143 = por %p141, %p142
      %p144 = scmp.le.s32.totalorder 1, %s11
      %p145 = scmp.lt.s32.totalorder %s11, 3
      %p146 = pnand %p144, %p145
      %p147 = pneg %p146
      // Predicated region
      $region9: #{skipgram_neg_loss.1} parent=5 // pred_check
        _
      $region10: #{skipgram_neg_loss.1} parent=5 // pred_check_branch
        %149 = sbr.rel (%p146) target = $region12
      $region11: #{skipgram_neg_loss.1} parent=5 // pred_region
        %s150 = ssub.s32 %s11, 1
        // Predicated region
        $region13: #{skipgram_neg_loss.1} parent=11 // pred_check
          %p151 = pneg %p110
        $region14: #{skipgram_neg_loss.1} parent=11 // pred_check_branch
          %153 = sbr.rel (%p151) target = $region16
        $region15: #{skipgram_neg_loss.1} parent=11 // pred_region
          %s155 = ssub.s32 4096, 4096
          %156 = vsyncadd [#allocation3], %s155
          %s157 = sshll.u32 [#allocation2], 4
          %s158 = int_to_ptr.vmem [resolvable:$true] %s157
          %163 = dma.hbm_to_vmem [thread:$0]  %s3, 4096, %s158, [#allocation3], 128, 128, 8
        $region16: #{skipgram_neg_loss.1} parent=11 // pred_fallthru
          _
      $region12: #{skipgram_neg_loss.1} parent=5 // pred_fallthru
        _
      %p164 = scmp.lt.s32.totalorder %s11, 2
      // Predicated region
      $region17: #{skipgram_neg_loss.1} parent=5 // pred_check
        %p165 = pneg %p164
      $region18: #{skipgram_neg_loss.1} parent=5 // pred_check_branch
        %167 = sbr.rel (%p165) target = $region20
      $region19: #{skipgram_neg_loss.1} parent=5 // pred_region
        // Predicated region
        $region21: #{skipgram_neg_loss.1} parent=19 // pred_check
          %p168 = pneg %p31
        $region22: #{skipgram_neg_loss.1} parent=19 // pred_check_branch
          %170 = sbr.rel (%p168) target = $region24
        $region23: #{skipgram_neg_loss.1} parent=19 // pred_region
          %p171 = scmp.lt.s32.totalorder %s11, 1
          %s172 = scalar_select %p171, %s11, 1
          %s173 = smul.addr %s172, 8
          %s174 = scalar_lea.vmem %s0, %s173
        $region24: #{skipgram_neg_loss.1} parent=19 // pred_fallthru
          _
        // Predicated region
        $region25: #{skipgram_neg_loss.1} parent=19 // pred_check
          %p175 = pneg %p57
        $region26: #{skipgram_neg_loss.1} parent=19 // pred_check_branch
          %177 = sbr.rel (%p175) target = $region28
        $region27: #{skipgram_neg_loss.1} parent=19 // pred_region
          %p178 = scmp.lt.s32.totalorder %s11, 1
          %s179 = scalar_select %p178, %s11, 1
          %s180 = smul.addr %s179, 8
          %s181 = scalar_lea.vmem %s1, %s180
        $region28: #{skipgram_neg_loss.1} parent=19 // pred_fallthru
          _
        // Predicated region
        $region29: #{skipgram_neg_loss.1} parent=19 // pred_check
          %p182 = pneg %p83
        $region30: #{skipgram_neg_loss.1} parent=19 // pred_check_branch
          %184 = sbr.rel (%p182) target = $region32
        $region31: #{skipgram_neg_loss.1} parent=19 // pred_region
          %p185 = scmp.lt.s32.totalorder %s11, 1
          %s186 = scalar_select %p185, %s11, 1
          %s187 = smul.addr %s186, 8
          %s188 = scalar_lea.vmem %s2, %s187
        $region32: #{skipgram_neg_loss.1} parent=19 // pred_fallthru
          _
      $region20: #{skipgram_neg_loss.1} parent=5 // pred_fallthru
        _
      %p189 = scmp.le.s32.totalorder 1, %s11
      %p190 = scmp.lt.s32.totalorder %s11, 3
      %p191 = pnand %p189, %p190
      %p192 = pneg %p191
      // Predicated region
      $region33: #{skipgram_neg_loss.1} parent=5 // pred_check
        _
      $region34: #{skipgram_neg_loss.1} parent=5 // pred_check_branch
        %194 = sbr.rel (%p191) target = $region36
      $region35: #{skipgram_neg_loss.1} parent=5 // pred_region
        %s195 = ssub.s32 %s11, 1
        // Predicated region
        $region37: #{skipgram_neg_loss.1} parent=35 // pred_check
          %p196 = pneg %p110
        $region38: #{skipgram_neg_loss.1} parent=35 // pred_check_branch
          %198 = sbr.rel (%p196) target = $region40
        $region39: #{skipgram_neg_loss.1} parent=35 // pred_region
          %199 = dma.done [#allocation3], 4096
        $region40: #{skipgram_neg_loss.1} parent=35 // pred_fallthru
          _
        %p200 = scmp.lt.s32.totalorder %s16, 1
        %s201 = scalar_select %p200, %s16, 1
        %s202 = smul.addr %s201, 8
        %s203 = scalar_lea.vmem %s0, %s202
        %p204 = pneg %p37
        %p205 = pneg %p34
        %p206 = scmp.lt.s32.totalorder %s16, 1
        %s207 = scalar_select %p206, %s16, 1
        %s208 = smul.addr %s207, 8
        %s209 = scalar_lea.vmem %s1, %s208
        %p210 = pneg %p63
        %p211 = pneg %p60
        %p212 = scmp.lt.s32.totalorder %s16, 1
        %s213 = scalar_select %p212, %s16, 1
        %s214 = smul.addr %s213, 8
        %s215 = scalar_lea.vmem %s2, %s214
        %p216 = pneg %p89
        %p217 = pneg %p86
        %p218 = pneg %p110
        %p219 = pneg %p107
        %p220 = pneg %p136
        %p221 = pneg %p133
        %p222 = scmp.lt.s32.totalorder %s16, 1
        %s223 = scalar_select %p222, %s16, 1
        %s224 = smul.addr %s223, 8
        %s225 = scalar_lea.vmem %s4, %s224
        %p226 = scmp.lt.s32.totalorder %s16, 1
        %s227 = scalar_select %p226, %s16, 1
        %s228 = smul.addr %s227, 8
        %s229 = scalar_lea.vmem %s0, %s228
        %p230 = scmp.lt.s32.totalorder %s16, 1
        %s231 = scalar_select %p230, %s16, 1
        %s232 = smul.addr %s231, 8
        %s233 = scalar_lea.vmem %s1, %s232
        %p234 = scmp.lt.s32.totalorder %s16, 1
        %s235 = scalar_select %p234, %s16, 1
        %s236 = smul.addr %s235, 8
        %s237 = scalar_lea.vmem %s2, %s236
        %p238 = scmp.lt.s32.totalorder %s16, 1
        %s239 = scalar_select %p238, %s16, 1
        %s240 = smul.addr %s239, 8
        %s241 = scalar_lea.vmem %s4, %s240
        %v242 = vld [vmem:[#allocation2] sm:$0xff]
        %v243 = vld [vmem:[#allocation2 + $0x8] sm:$0xff]
        %v244 = vld [vmem:[#allocation2 + $0x10] sm:$0xff]
        %v245 = vld [vmem:[#allocation2 + $0x18] sm:$0xff]
        %v246 = vld [vmem:[#allocation2 + $0x20] sm:$0xff]
        %v247 = vld [vmem:[#allocation2 + $0x28] sm:$0xff]
        %v248 = vld [vmem:[#allocation2 + $0x30] sm:$0xff]
        %v249 = vld [vmem:[#allocation2 + $0x38] sm:$0xff]
        %v250 = vld [vmem:[#allocation2 + $0x40] sm:$0xff]
        %v251 = vld [vmem:[#allocation2 + $0x48] sm:$0xff]
        %v252 = vld [vmem:[#allocation2 + $0x50] sm:$0xff]
        %v253 = vld [vmem:[#allocation2 + $0x58] sm:$0xff]
        %v254 = vld [vmem:[#allocation2 + $0x60] sm:$0xff]
        %v255 = vld [vmem:[#allocation2 + $0x68] sm:$0xff]
        %v256 = vld [vmem:[#allocation2 + $0x70] sm:$0xff]
        %v257 = vld [vmem:[#allocation2 + $0x78] sm:$0xff]
        %v258 = vld [vmem:[#allocation2 + $0x80] sm:$0xff]
        %v259 = vld [vmem:[#allocation2 + $0x88] sm:$0xff]
        %v260 = vld [vmem:[#allocation2 + $0x90] sm:$0xff]
        %v261 = vld [vmem:[#allocation2 + $0x98] sm:$0xff]
        %v262 = vld [vmem:[#allocation2 + $0xa0] sm:$0xff]
        %v263 = vld [vmem:[#allocation2 + $0xa8] sm:$0xff]
        %v264 = vld [vmem:[#allocation2 + $0xb0] sm:$0xff]
        %v265 = vld [vmem:[#allocation2 + $0xb8] sm:$0xff]
        %v266 = vld [vmem:[#allocation2 + $0xc0] sm:$0xff]
        %v267 = vld [vmem:[#allocation2 + $0xc8] sm:$0xff]
        %v268 = vld [vmem:[#allocation2 + $0xd0] sm:$0xff]
        %v269 = vld [vmem:[#allocation2 + $0xd8] sm:$0xff]
        %v270 = vld [vmem:[#allocation2 + $0xe0] sm:$0xff]
        %v271 = vld [vmem:[#allocation2 + $0xe8] sm:$0xff]
        %v272 = vld [vmem:[#allocation2 + $0xf0] sm:$0xff]
        %v273 = vld [vmem:[#allocation2 + $0xf8] sm:$0xff]
        %v274 = vlaneseq
        %v275 = vand.u32 %v274, 127
        %v276 = vadd.s32 %v275, 128
        %v277 = vld [vmem:[%s229] sm:$0xff]
        %278 = vset.pattern.permute.xlu0 0
        %279 = vperm.xlu0 %278, %v277
        %v280 = vpop.permute.xlu0 %279
        %vm281 = vcmp.eq.s32.totalorder %v275, %v280
        %vm282 = vcmp.eq.s32.totalorder %v276, %v280
        %v283 = vsel %vm281, 1, 0
        %v284 = vsel %vm282, 1, 0
        %v285 = vcvt.s32.f32 %v283
        %v286 = vcvt.s32.f32 %v284
        %v287 = vld [vmem:[%s233] sm:$0xff]
        %288 = vset.pattern.permute.xlu0 0
        %289 = vperm.xlu0 %288, %v287
        %v290 = vpop.permute.xlu0 %289
        %vm291 = vcmp.eq.s32.totalorder %v275, %v290
        %vm292 = vcmp.eq.s32.totalorder %v276, %v290
        %v293 = vsel %vm291, 1, 0
        %v294 = vsel %vm292, 1, 0
        %v295 = vcvt.s32.f32 %v293
        %v296 = vcvt.s32.f32 %v294
        %v297 = vld [vmem:[%s237] sm:$0xff]
        %298 = vset.pattern.permute.xlu0 0
        %299 = vperm.xlu0 %298, %v297
        %v300 = vpop.permute.xlu0 %299
        %vm301 = vcmp.eq.s32.totalorder %v275, %v300
        %vm302 = vcmp.eq.s32.totalorder %v276, %v300
        %v303 = vsel %vm301, 1, 0
        %v304 = vsel %vm302, 1, 0
        %v305 = vcvt.s32.f32 %v303
        %v306 = vcvt.s32.f32 %v304
        %v307 = vadd.f32 %v305, 0.0
        %v308 = vadd.f32 %v306, 0.0
        %309 = vset.pattern.permute.xlu0 1
        %310 = vperm.xlu0 %309, %v297
        %v311 = vpop.permute.xlu0 %310
        %vm312 = vcmp.eq.s32.totalorder %v275, %v311
        %vm313 = vcmp.eq.s32.totalorder %v276, %v311
        %v314 = vsel %vm312, 1, 0
        %v315 = vsel %vm313, 1, 0
        %v316 = vcvt.s32.f32 %v314
        %v317 = vcvt.s32.f32 %v315
        %v318 = vadd.f32 %v307, %v316
        %v319 = vadd.f32 %v308, %v317
        %320 = vset.pattern.permute.xlu0 2
        %321 = vperm.xlu0 %320, %v297
        %v322 = vpop.permute.xlu0 %321
        %vm323 = vcmp.eq.s32.totalorder %v275, %v322
        %vm324 = vcmp.eq.s32.totalorder %v276, %v322
        %v325 = vsel %vm323, 1, 0
        %v326 = vsel %vm324, 1, 0
        %v327 = vcvt.s32.f32 %v325
        %v328 = vcvt.s32.f32 %v326
        %v329 = vadd.f32 %v318, %v327
        %v330 = vadd.f32 %v319, %v328
        %331 = vset.pattern.permute.xlu0 3
        %332 = vperm.xlu0 %331, %v297
        %v333 = vpop.permute.xlu0 %332
        %vm334 = vcmp.eq.s32.totalorder %v275, %v333
        %vm335 = vcmp.eq.s32.totalorder %v276, %v333
        %v336 = vsel %vm334, 1, 0
        %v337 = vsel %vm335, 1, 0
        %v338 = vcvt.s32.f32 %v336
        %v339 = vcvt.s32.f32 %v337
        %v340 = vadd.f32 %v329, %v338
        %v341 = vadd.f32 %v330, %v339
        %342 = vmatprep.subr.mxu0 0.0
        %343 = vmatpush1.msra.mxu0 %v242
        %344 = vmatprep.subr.mxu0 0.0
        %345 = vmatpush1.msra.mxu0 %v243
        %346 = vmatprep.subr.mxu0 0.0
        %347 = vmatpush1.msra.mxu0 %v244
        %348 = vmatprep.subr.mxu0 0.0
        %349 = vmatpush1.msra.mxu0 %v245
        %350 = vmatprep.subr.mxu0 0.0
        %351 = vmatpush1.msra.mxu0 %v246
        %352 = vmatprep.subr.mxu0 0.0
        %353 = vmatpush1.msra.mxu0 %v247
        %354 = vmatprep.subr.mxu0 0.0
        %355 = vmatpush1.msra.mxu0 %v248
        %356 = vmatprep.subr.mxu0 0.0
        %357 = vmatpush1.msra.mxu0 %v249
        %358 = vmatprep.subr.mxu0 0.0
        %359 = vmatpush1.msra.mxu0 %v250
        %360 = vmatprep.subr.mxu0 0.0
        %361 = vmatpush1.msra.mxu0 %v251
        %362 = vmatprep.subr.mxu0 0.0
        %363 = vmatpush1.msra.mxu0 %v252
        %364 = vmatprep.subr.mxu0 0.0
        %365 = vmatpush1.msra.mxu0 %v253
        %366 = vmatprep.subr.mxu0 0.0
        %367 = vmatpush1.msra.mxu0 %v254
        %368 = vmatprep.subr.mxu0 0.0
        %369 = vmatpush1.msra.mxu0 %v255
        %370 = vmatprep.subr.mxu0 0.0
        %371 = vmatpush1.msra.mxu0 %v256
        %372 = vmatprep.subr.mxu0 0.0
        %373 = vmatpush1.msra.mxu0 %v257
        %374 = vmatprep.subr.mxu0 0.0
        %375 = vmatpush1.msra.mxu0 %v258
        %376 = vmatprep.subr.mxu0 0.0
        %377 = vmatpush1.msra.mxu0 %v259
        %378 = vmatprep.subr.mxu0 0.0
        %379 = vmatpush1.msra.mxu0 %v260
        %380 = vmatprep.subr.mxu0 0.0
        %381 = vmatpush1.msra.mxu0 %v261
        %382 = vmatprep.subr.mxu0 0.0
        %383 = vmatpush1.msra.mxu0 %v262
        %384 = vmatprep.subr.mxu0 0.0
        %385 = vmatpush1.msra.mxu0 %v263
        %386 = vmatprep.subr.mxu0 0.0
        %387 = vmatpush1.msra.mxu0 %v264
        %388 = vmatprep.subr.mxu0 0.0
        %389 = vmatpush1.msra.mxu0 %v265
        %390 = vmatprep.subr.mxu0 0.0
        %391 = vmatpush1.msra.mxu0 %v266
        %392 = vmatprep.subr.mxu0 0.0
        %393 = vmatpush1.msra.mxu0 %v267
        %394 = vmatprep.subr.mxu0 0.0
        %395 = vmatpush1.msra.mxu0 %v268
        %396 = vmatprep.subr.mxu0 0.0
        %397 = vmatpush1.msra.mxu0 %v269
        %398 = vmatprep.subr.mxu0 0.0
        %399 = vmatpush1.msra.mxu0 %v270
        %400 = vmatprep.subr.mxu0 0.0
        %401 = vmatpush1.msra.mxu0 %v271
        %402 = vmatprep.subr.mxu0 0.0
        %403 = vmatpush1.msra.mxu0 %v272
        %404 = vmatprep.subr.mxu0 0.0
        %405 = vmatpush1.msra.mxu0 %v273
        %406 = vmatprep.mubr.f32.mxu0 %v286
        %407 = vmatmul.mubr.f32.gmra.mrb[0].mxu0 %v285
        %v408 = vpop.f32.mrb[0].mxu0
        %v409 = vadd.f32 0.0, %v408
        %v410 = vpop.f32.mrb[0].mxu0
        %411 = vdwg.mxu0
        %412 = vmatprep.subr.mxu0 0.0
        %413 = vmatpush1.msra.mxu0 %v242
        %414 = vmatprep.subr.mxu0 0.0
        %415 = vmatpush1.msra.mxu0 %v243
        %416 = vmatprep.subr.mxu0 0.0
        %417 = vmatpush1.msra.mxu0 %v244
        %418 = vmatprep.subr.mxu0 0.0
        %419 = vmatpush1.msra.mxu0 %v245
        %420 = vmatprep.subr.mxu0 0.0
        %421 = vmatpush1.msra.mxu0 %v246
        %422 = vmatprep.subr.mxu0 0.0
        %423 = vmatpush1.msra.mxu0 %v247
        %424 = vmatprep.subr.mxu0 0.0
        %425 = vmatpush1.msra.mxu0 %v248
        %426 = vmatprep.subr.mxu0 0.0
        %427 = vmatpush1.msra.mxu0 %v249
        %428 = vmatprep.subr.mxu0 0.0
        %429 = vmatpush1.msra.mxu0 %v250
        %430 = vmatprep.subr.mxu0 0.0
        %431 = vmatpush1.msra.mxu0 %v251
        %432 = vmatprep.subr.mxu0 0.0
        %433 = vmatpush1.msra.mxu0 %v252
        %434 = vmatprep.subr.mxu0 0.0
        %435 = vmatpush1.msra.mxu0 %v253
        %436 = vmatprep.subr.mxu0 0.0
        %437 = vmatpush1.msra.mxu0 %v254
        %438 = vmatprep.subr.mxu0 0.0
        %439 = vmatpush1.msra.mxu0 %v255
        %440 = vmatprep.subr.mxu0 0.0
        %441 = vmatpush1.msra.mxu0 %v256
        %442 = vmatprep.subr.mxu0 0.0
        %443 = vmatpush1.msra.mxu0 %v257
        %444 = vmatprep.subr.mxu0 0.0
        %445 = vmatpush1.msra.mxu0 %v258
        %446 = vmatprep.subr.mxu0 0.0
        %447 = vmatpush1.msra.mxu0 %v259
        %448 = vmatprep.subr.mxu0 0.0
        %449 = vmatpush1.msra.mxu0 %v260
        %450 = vmatprep.subr.mxu0 0.0
        %451 = vmatpush1.msra.mxu0 %v261
        %452 = vmatprep.subr.mxu0 0.0
        %453 = vmatpush1.msra.mxu0 %v262
        %454 = vmatprep.subr.mxu0 0.0
        %455 = vmatpush1.msra.mxu0 %v263
        %456 = vmatprep.subr.mxu0 0.0
        %457 = vmatpush1.msra.mxu0 %v264
        %458 = vmatprep.subr.mxu0 0.0
        %459 = vmatpush1.msra.mxu0 %v265
        %460 = vmatprep.subr.mxu0 0.0
        %461 = vmatpush1.msra.mxu0 %v266
        %462 = vmatprep.subr.mxu0 0.0
        %463 = vmatpush1.msra.mxu0 %v267
        %464 = vmatprep.subr.mxu0 0.0
        %465 = vmatpush1.msra.mxu0 %v268
        %466 = vmatprep.subr.mxu0 0.0
        %467 = vmatpush1.msra.mxu0 %v269
        %468 = vmatprep.subr.mxu0 0.0
        %469 = vmatpush1.msra.mxu0 %v270
        %470 = vmatprep.subr.mxu0 0.0
        %471 = vmatpush1.msra.mxu0 %v271
        %472 = vmatprep.subr.mxu0 0.0
        %473 = vmatpush1.msra.mxu0 %v272
        %474 = vmatprep.subr.mxu0 0.0
        %475 = vmatpush1.msra.mxu0 %v273
        %476 = vmatprep.mubr.f32.mxu0 %v296
        %477 = vmatmul.mubr.f32.gmra.mrb[0].mxu0 %v295
        %v478 = vpop.f32.mrb[0].mxu0
        %v479 = vadd.f32 0.0, %v478
        %v480 = vpop.f32.mrb[0].mxu0
        %481 = vdwg.mxu0
        %482 = vmatprep.subr.mxu0 0.0
        %483 = vmatpush1.msra.mxu0 %v242
        %484 = vmatprep.subr.mxu0 0.0
        %485 = vmatpush1.msra.mxu0 %v243
        %486 = vmatprep.subr.mxu0 0.0
        %487 = vmatpush1.msra.mxu0 %v244
        %488 = vmatprep.subr.mxu0 0.0
        %489 = vmatpush1.msra.mxu0 %v245
        %490 = vmatprep.subr.mxu0 0.0
        %491 = vmatpush1.msra.mxu0 %v246
        %492 = vmatprep.subr.mxu0 0.0
        %493 = vmatpush1.msra.mxu0 %v247
        %494 = vmatprep.subr.mxu0 0.0
        %495 = vmatpush1.msra.mxu0 %v248
        %496 = vmatprep.subr.mxu0 0.0
        %497 = vmatpush1.msra.mxu0 %v249
        %498 = vmatprep.subr.mxu0 0.0
        %499 = vmatpush1.msra.mxu0 %v250
        %500 = vmatprep.subr.mxu0 0.0
        %501 = vmatpush1.msra.mxu0 %v251
        %502 = vmatprep.subr.mxu0 0.0
        %503 = vmatpush1.msra.mxu0 %v252
        %504 = vmatprep.subr.mxu0 0.0
        %505 = vmatpush1.msra.mxu0 %v253
        %506 = vmatprep.subr.mxu0 0.0
        %507 = vmatpush1.msra.mxu0 %v254
        %508 = vmatprep.subr.mxu0 0.0
        %509 = vmatpush1.msra.mxu0 %v255
        %510 = vmatprep.subr.mxu0 0.0
        %511 = vmatpush1.msra.mxu0 %v256
        %512 = vmatprep.subr.mxu0 0.0
        %513 = vmatpush1.msra.mxu0 %v257
        %514 = vmatprep.subr.mxu0 0.0
        %515 = vmatpush1.msra.mxu0 %v258
        %516 = vmatprep.subr.mxu0 0.0
        %517 = vmatpush1.msra.mxu0 %v259
        %518 = vmatprep.subr.mxu0 0.0
        %519 = vmatpush1.msra.mxu0 %v260
        %520 = vmatprep.subr.mxu0 0.0
        %521 = vmatpush1.msra.mxu0 %v261
        %522 = vmatprep.subr.mxu0 0.0
        %523 = vmatpush1.msra.mxu0 %v262
        %524 = vmatprep.subr.mxu0 0.0
        %525 = vmatpush1.msra.mxu0 %v263
        %526 = vmatprep.subr.mxu0 0.0
        %527 = vmatpush1.msra.mxu0 %v264
        %528 = vmatprep.subr.mxu0 0.0
        %529 = vmatpush1.msra.mxu0 %v265
        %530 = vmatprep.subr.mxu0 0.0
        %531 = vmatpush1.msra.mxu0 %v266
        %532 = vmatprep.subr.mxu0 0.0
        %533 = vmatpush1.msra.mxu0 %v267
        %534 = vmatprep.subr.mxu0 0.0
        %535 = vmatpush1.msra.mxu0 %v268
        %536 = vmatprep.subr.mxu0 0.0
        %537 = vmatpush1.msra.mxu0 %v269
        %538 = vmatprep.subr.mxu0 0.0
        %539 = vmatpush1.msra.mxu0 %v270
        %540 = vmatprep.subr.mxu0 0.0
        %541 = vmatpush1.msra.mxu0 %v271
        %542 = vmatprep.subr.mxu0 0.0
        %543 = vmatpush1.msra.mxu0 %v272
        %544 = vmatprep.subr.mxu0 0.0
        %545 = vmatpush1.msra.mxu0 %v273
        %546 = vmatprep.mubr.f32.mxu0 %v341
        %547 = vmatmul.mubr.f32.gmra.mrb[0].mxu0 %v340
        %v548 = vpop.f32.mrb[0].mxu0
        %v549 = vadd.f32 0.0, %v548
        %v550 = vpop.f32.mrb[0].mxu0
        %551 = vdwg.mxu0
        %v552 = vmul.f32 %v479, %v409
        %553 = vadd.xlane.f32.xlu0 %v552
        %v554 = vpop.xlane.xlu0 %553
        %v555 = vmul.f32 %v549, %v409
        %556 = vadd.xlane.f32.xlu0 %v555
        %v557 = vpop.xlane.xlu0 %556
        %v558 = vmin.f32 %v554, 0.0
        %v559 = vand.u32 2147483647, %v554
        %v560 = vsub.f32 0.0, %v559
        %v561 = vmul.f32 %v560, 1.442695
        %v562 = vpow.pop %v561
        %v563 = vadd.f32 %v562, 1.0
        %v564 = vlog2.pop %v563
        %v565 = vmul.f32 %v564, 0.6931472
        %v566 = vmul.f32 -0.5, %v562
        %v567 = vadd.f32 %v566, 1.0
        %v568 = vmul.f32 %v567, %v562
        %v569 = vand.u32 2147483647, %v562
        %vm570 = vcmp.lt.f32.partialorder %v569, 0.0004427343
        %v571 = vsel %vm570, %v568, %v565
        %v572 = vsub.f32 %v558, %v571
        %v573 = vsub.f32 0.0, %v557
        %v574 = vmin.f32 %v573, 0.0
        %v575 = vand.u32 2147483647, %v573
        %v576 = vsub.f32 0.0, %v575
        %v577 = vmul.f32 %v576, 1.442695
        %v578 = vpow.pop %v577
        %v579 = vadd.f32 %v578, 1.0
        %v580 = vlog2.pop %v579
        %v581 = vmul.f32 %v580, 0.6931472
        %v582 = vmul.f32 -0.5, %v578
        %v583 = vadd.f32 %v582, 1.0
        %v584 = vmul.f32 %v583, %v578
        %v585 = vand.u32 2147483647, %v578
        %vm586 = vcmp.lt.f32.partialorder %v585, 0.0004427343
        %v587 = vsel %vm586, %v584, %v581
        %v588 = vsub.f32 %v574, %v587
        %v589 = vadd.f32 %v572, %v588
        %vm590 = vcmask 7168
        %591 = vst.msk [vmem:[%s241] sm:$0xff] %vm590, %v589
        %p592 = scmp.lt.s32.totalorder %s16, 1
        %s593 = scalar_select %p592, %s16, 1
        %s594 = smul.addr %s593, 8
        %s595 = scalar_lea.vmem %s4, %s594
        // Predicated region
        $region41: #{skipgram_neg_loss.1} parent=35 // pred_check
          %p596 = pneg %p133
        $region42: #{skipgram_neg_loss.1} parent=35 // pred_check_branch
          %598 = sbr.rel (%p596) target = $region44
        $region43: #{skipgram_neg_loss.1} parent=35 // pred_region
          _
        $region44: #{skipgram_neg_loss.1} parent=35 // pred_fallthru
          _
      $region36: #{skipgram_neg_loss.1} parent=5 // pred_fallthru
        _
      %p599 = scmp.le.s32.totalorder 2, %s11
      // Predicated region
      $region45: #{skipgram_neg_loss.1} parent=5 // pred_check
        %p600 = pneg %p599
      $region46: #{skipgram_neg_loss.1} parent=5 // pred_check_branch
        %602 = sbr.rel (%p600) target = $region48
      $region47: #{skipgram_neg_loss.1} parent=5 // pred_region
        %s603 = ssub.s32 %s11, 2
        // Predicated region
        $region49: #{skipgram_neg_loss.1} parent=47 // pred_check
          %p604 = pneg %p139
        $region50: #{skipgram_neg_loss.1} parent=47 // pred_check_branch
          %606 = sbr.rel (%p604) target = $region52
        $region51: #{skipgram_neg_loss.1} parent=47 // pred_region
          %p607 = scmp.lt.s32.totalorder %s17, 1
          %s608 = scalar_select %p607, %s17, 1
          %s609 = smul.addr %s608, 8
          %s610 = scalar_lea.vmem %s4, %s609
        $region52: #{skipgram_neg_loss.1} parent=47 // pred_fallthru
          _
      $region48: #{skipgram_neg_loss.1} parent=5 // pred_fallthru
        _
    $region6: #{skipgram_neg_loss.1} parent=1 // loop_footer
      %s15 = sadd.s32 1, %s11
    $region7: #{skipgram_neg_loss.1} parent=1 // loop_footer_branch
      %10 = sbr.rel target = $region3
    $region8: #{skipgram_neg_loss.1} parent=1 // loop_exit
      _
    %611 = vsyncpa [#allocation3], 1
    %s612 = scalar_lea.sflag [#allocation3], 1
    %613 = vsyncpa %s612, 1

</llo_original>
